<compile_context>
chip_gen: v7x
topology: tpu7x:2x2x1
jax: 0.10.0
libtpu: 0.0.40
codegen_flags: <defaults>
</compile_context>

<pallas_src>
import functools

import jax
import jax.numpy as jnp
import numpy as np
from jax import lax
from jax.experimental import pallas as pl
from jax.experimental.pallas import tpu as pltpu

_LANES = 128


def _round_up(x, m):
    return ((x + m - 1) // m) * m


def _score_kernel(x_ref, wb_ref, b_ref, att_ref, psum_ref, *, rows_valid,
                  needs_mask):
    """Per-view, per-lane partial sums of tanh(x @ W.T + b) * att.

    x_ref:    (M, T, L) f32 lane-packed row tile of the stacked embeddings
    wb_ref:   (L, L)    f32 block-diagonal W.T (P copies on the diagonal)
    b_ref:    (1, L)    f32 bias tiled P times
    att_ref:  (1, L)    f32 att tiled P times
    psum_ref: (M, L)    f32 grid-resident accumulator (reduced+softmaxed outside)
    """
    i = pl.program_id(0)

    @pl.when(i == 0)
    def _init():
        psum_ref[...] = jnp.zeros_like(psum_ref)

    m, t, l = x_ref.shape
    x = x_ref[...].reshape(m * t, l)          # free merge: t is a multiple of 8
    sp = jnp.tanh(
        jnp.dot(x, wb_ref[...], preferred_element_type=jnp.float32)
        + b_ref[...])                          # (M*T, L)
    wv = (sp * att_ref[...]).reshape(m, t, l)  # (M, T, L)
    if needs_mask:                             # static; only for a ragged tail
        row = i * t + lax.broadcasted_iota(jnp.int32, (1, t, 1), 1)
        wv = jnp.where(row < rows_valid, wv, 0.0)
    psum_ref[...] += jnp.sum(wv, axis=1)       # one fused sublane reduction


def _wsum_kernel(beta_ref, x_ref, o_ref):
    """o = sum_m beta[m] * x[m].  beta_ref lives in SMEM (scalar reads)."""
    m = x_ref.shape[0]
    acc = x_ref[0] * beta_ref[0, 0]
    for j in range(1, m):
        acc = acc + x_ref[j] * beta_ref[0, j]
    o_ref[...] = acc.astype(o_ref.dtype)


@functools.partial(jax.jit, static_argnames=("block_bytes",))
def fus_att_forward(embeds, w, b, att, *, block_bytes=4 * 1024 * 1024):
    """embeds: (M, N, D); w: (D, D) torch Linear weight [out, in]; b: (D,);
    att: (1, D) or (D,).  Returns z_mc: (N, D)."""
    M, N, D = embeds.shape
    f32 = jnp.float32

    # ---- lane-packing geometry -------------------------------------------
    if D >= _LANES:
        dp = _round_up(D, _LANES)            # features -> multiple of 128
        P = 1
    else:
        dp = 1
        while dp < D:                         # smallest power of two >= D
            dp *= 2                           # (always divides 128)
        P = _LANES // dp                      # original rows per 128-lane row
    L = P * dp                                # lane width of the packed layout

    # Row padding: N to a multiple of P (exact packed reshape) and at least 8
    # packed rows (sublane-aligned tiles).  Zero rows add the same constant to
    # every view's score (softmax shift-invariant; mean divides by the true N)
    # and their output rows are sliced off.
    n_pad = max(_round_up(N, P), 8 * P)

    x = embeds.astype(f32)
    if n_pad != N or dp != D:
        # TODO(synk): this materializes one padded copy of embeds in HBM; for
        # large inputs keep N % P == 0 and D a divisor/multiple of 128 to skip it.
        x = jnp.pad(x, ((0, 0), (0, n_pad - N), (0, dp - D)))
    rows = (n_pad * dp) // L                  # packed lane-rows per view (>= 8)
    x2 = x.reshape(M, rows, L)                # contiguous merge: free reshape

    # Parameters: feature-pad to dp, lane-tile to L, block-diagonalize W.T.
    wt = jnp.zeros((dp, dp), f32).at[:D, :D].set(jnp.transpose(w.astype(f32)))
    wb = jnp.kron(jnp.eye(P, dtype=f32), wt)                       # (L, L)
    b_t = jnp.tile(jnp.zeros((1, dp), f32).at[0, :D].set(
        b.astype(f32).reshape(-1)), (1, P))                        # (1, L)
    att_t = jnp.tile(jnp.zeros((1, dp), f32).at[0, :D].set(
        att.astype(f32).reshape(-1)), (1, P))                      # (1, L)

    def pick_tile(target_bytes):
        # ~target_bytes per (M, T, L) f32 input block, T a multiple of 8.
        t = max(8, (target_bytes // (M * L * 4)) // 8 * 8)
        return min(t, (rows // 8) * 8)

    # ---------------- Phase 1: per-view score partial sums ----------------
    t1 = pick_tile(block_bytes)
    g1 = pl.cdiv(rows, t1)
    psum = pl.pallas_call(
        functools.partial(_score_kernel, rows_valid=rows,
                          needs_mask=(g1 * t1 != rows)),
        out_shape=jax.ShapeDtypeStruct((M, L), f32),
        grid=(g1,),
        in_specs=[
            pl.BlockSpec((M, t1, L), lambda i: (0, i, 0)),
            pl.BlockSpec((L, L), lambda i: (0, 0)),
            pl.BlockSpec((1, L), lambda i: (0, 0)),
            pl.BlockSpec((1, L), lambda i: (0, 0)),
        ],
        out_specs=pl.BlockSpec((M, L), lambda i: (0, 0)),
        compiler_params=pltpu.CompilerParams(
            dimension_semantics=("arbitrary",),
            vmem_limit_bytes=32 * 1024 * 1024),
    )(x2, wb, b_t, att_t)

    # Tiny finalize in plain jnp: lane reduction, mean over the TRUE N, softmax.
    scores = jnp.sum(psum, axis=-1) * (1.0 / N)          # (M,)
    beta = jax.nn.softmax(scores)                        # (M,)
    beta2 = beta.reshape(1, M).astype(f32)

    # ---------------- Phase 2: z = sum_m beta[m] * embeds[m] --------------
    t2 = pick_tile(block_bytes)
    g2 = pl.cdiv(rows, t2)
    z2 = pl.pallas_call(
        _wsum_kernel,
        out_shape=jax.ShapeDtypeStruct((rows, L), f32),
        grid=(g2,),
        in_specs=[
            pl.BlockSpec(memory_space=pltpu.MemorySpace.SMEM),   # beta (1, M)
            pl.BlockSpec((M, t2, L), lambda i: (0, i, 0)),
        ],
        out_specs=pl.BlockSpec((t2, L), lambda i: (i, 0)),
        compiler_params=pltpu.CompilerParams(
            dimension_semantics=("parallel",),
            vmem_limit_bytes=32 * 1024 * 1024),
    )(beta2, x2)

    z = z2.reshape(n_pad, dp)[:N, :D]
    return z.astype(embeds.dtype)


def fus_att_reference(embeds, w, b, att):
    """Pure-JAX reference mirroring the PyTorch forward."""
    M = embeds.shape[0]
    scores = []
    for m in range(M):
        sp = jnp.tanh(embeds[m] @ w.T + b)                # (N, D)
        scores.append(jnp.mean(sp @ att.reshape(-1, 1)))  # scalar
    beta = jax.nn.softmax(jnp.stack(scores))
    z = jnp.zeros_like(embeds[0])
    for m in range(M):
        z = z + embeds[m] * beta[m]
    return z


if __name__ == "__main__":
    # Small shapes consistent with the module: M views, N nodes, hidden_dim D.
    M, N, D = 3, 8, 32

    key = jax.random.PRNGKey(0)
    k_emb, k_w, k_b, k_att = jax.random.split(key, 4)

    embeds = jax.random.normal(k_emb, (M, N, D), dtype=jnp.float32)

    # Deterministic parameter init matching PyTorch semantics:
    # xavier_normal_(fc.weight, gain=1.414): std = gain*sqrt(2/(fan_in+fan_out))
    w_std = 1.414 * np.sqrt(2.0 / (D + D))
    w = w_std * jax.random.normal(k_w, (D, D), dtype=jnp.float32)
    # nn.Linear default bias init: U(-1/sqrt(fan_in), 1/sqrt(fan_in))
    b_bound = 1.0 / np.sqrt(D)
    b = jax.random.uniform(k_b, (D,), minval=-b_bound, maxval=b_bound,
                           dtype=jnp.float32)
    # xavier_normal_(att, gain=1.414) on shape (1, D): fan_in=D, fan_out=1
    att_std = 1.414 * np.sqrt(2.0 / (D + 1))
    att = att_std * jax.random.normal(k_att, (1, D), dtype=jnp.float32)

    out = jax.block_until_ready(fus_att_forward(embeds, w, b, att))
    ref = fus_att_reference(embeds, w, b, att)
    np.testing.assert_allclose(np.asarray(out), np.asarray(ref),
                               rtol=1e-5, atol=1e-5)

    # Also exercise the multi-step grid-accumulation path (several row tiles).
    N2 = 512
    embeds2 = jax.random.normal(jax.random.PRNGKey(1), (M, N2, D),
                                dtype=jnp.float32)
    out2 = jax.block_until_ready(
        fus_att_forward(embeds2, w, b, att, block_bytes=48 * 1024))
    ref2 = fus_att_reference(embeds2, w, b, att)
    np.testing.assert_allclose(np.asarray(out2), np.asarray(ref2),
                               rtol=1e-5, atol=1e-5)

    print("KERNEL_OK")
</pallas_src>

<mosaic_0001>
module attributes {stable_mosaic.version = 11 : i64} {
  func.func @_score_kernel(%arg0: i32, %arg1: memref<3x8x128xf32, #tpu.memory_space<vmem>>, %arg2: memref<128x128xf32, #tpu.memory_space<vmem>>, %arg3: memref<1x128xf32, #tpu.memory_space<vmem>>, %arg4: memref<1x128xf32, #tpu.memory_space<vmem>>, %arg5: memref<3x128xf32, #tpu.memory_space<vmem>>) attributes {dimension_semantics = [#tpu.dimension_semantics<arbitrary>], iteration_bounds = array<i64: 1>, scalar_prefetch = 0 : i64, scratch_operands = 0 : i64, tpu.core_type = #tpu.core_type<tc>, window_params = [{transform_indices = @transform_0, window_bounds = array<i64: 3, 8, 128>}, {pipeline_mode = #tpu.pipeline_mode<synchronous>, transform_indices = @transform_1, window_bounds = array<i64: 128, 128>}, {pipeline_mode = #tpu.pipeline_mode<synchronous>, transform_indices = @transform_2, window_bounds = array<i64: 1, 128>}, {pipeline_mode = #tpu.pipeline_mode<synchronous>, transform_indices = @transform_3, window_bounds = array<i64: 1, 128>}, {pipeline_mode = #tpu.pipeline_mode<synchronous>, transform_indices = @transform_4, window_bounds = array<i64: 3, 128>}]} {
    %c0_i32 = arith.constant 0 : i32
    %0 = arith.cmpi eq, %arg0, %c0_i32 : i32
    %1 = arith.extui %0 : i1 to i32
    %c0_i32_0 = arith.constant 0 : i32
    %2 = arith.cmpi ne, %1, %c0_i32_0 : i32
    scf.if %2 {
      %cst_14 = arith.constant 0.000000e+00 : f32
      %19 = vector.broadcast %cst_14 : f32 to vector<3x128xf32>
      %c0_15 = arith.constant 0 : index
      %c0_16 = arith.constant 0 : index
      %20 = vector.load %arg5[%c0_15, %c0_16] : memref<3x128xf32, #tpu.memory_space<vmem>>, vector<3x128xf32>
      tpu.vector_store %arg5[%c0_15, %c0_16], %19 {strides = array<i32>} : memref<3x128xf32, #tpu.memory_space<vmem>>, vector<3x128xf32>,
    } else {
    }
    %c0 = arith.constant 0 : index
    %c0_1 = arith.constant 0 : index
    %c0_2 = arith.constant 0 : index
    %3 = vector.load %arg1[%c0, %c0_1, %c0_2] : memref<3x8x128xf32, #tpu.memory_space<vmem>>, vector<3x8x128xf32>
    %4 = vector.shape_cast %3 : vector<3x8x128xf32> to vector<24x128xf32>
    %c0_3 = arith.constant 0 : index
    %c0_4 = arith.constant 0 : index
    %5 = vector.load %arg2[%c0_3, %c0_4] : memref<128x128xf32, #tpu.memory_space<vmem>>, vector<128x128xf32>
    %cst = arith.constant dense<0.000000e+00> : vector<24x128xf32>
    %6 = tpu.matmul %4, %5, %cst {dimension_numbers = #tpu.dot_dimension_numbers<[1], [0], [0], [1], [0, 0, 1, 1], [], []>} : vector<24x128xf32>, vector<128x128xf32>, vector<24x128xf32> -> vector<24x128xf32>
    %c0_5 = arith.constant 0 : index
    %c0_6 = arith.constant 0 : index
    %7 = vector.load %arg3[%c0_5, %c0_6] : memref<1x128xf32, #tpu.memory_space<vmem>>, vector<1x128xf32>
    %8 = vector.broadcast %7 : vector<1x128xf32> to vector<24x128xf32>
    %9 = arith.addf %6, %8 : vector<24x128xf32>
    %10 = math.tanh %9 : vector<24x128xf32>
    %c0_7 = arith.constant 0 : index
    %c0_8 = arith.constant 0 : index
    %11 = vector.load %arg4[%c0_7, %c0_8] : memref<1x128xf32, #tpu.memory_space<vmem>>, vector<1x128xf32>
    %12 = vector.broadcast %11 : vector<1x128xf32> to vector<24x128xf32>
    %13 = arith.mulf %10, %12 : vector<24x128xf32>
    %14 = vector.shape_cast %13 : vector<24x128xf32> to vector<3x8x128xf32>
    %c0_9 = arith.constant 0 : index
    %c0_10 = arith.constant 0 : index
    %15 = vector.load %arg5[%c0_9, %c0_10] : memref<3x128xf32, #tpu.memory_space<vmem>>, vector<3x128xf32>
    %cst_11 = arith.constant dense<0.000000e+00> : vector<3x128xf32>
    %16 = vector.multi_reduction <add>, %14, %cst_11 [1] : vector<3x8x128xf32> to vector<3x128xf32>
    %17 = arith.addf %15, %16 : vector<3x128xf32>
    %c0_12 = arith.constant 0 : index
    %c0_13 = arith.constant 0 : index
    %18 = vector.load %arg5[%c0_12, %c0_13] : memref<3x128xf32, #tpu.memory_space<vmem>>, vector<3x128xf32>
    tpu.vector_store %arg5[%c0_12, %c0_13], %17 {strides = array<i32>} : memref<3x128xf32, #tpu.memory_space<vmem>>, vector<3x128xf32>,
    return
  }
  func.func @transform_0(%arg0: i32) -> (i32, i32, i32) {
    %c0_i32 = arith.constant 0 : i32
    %c0_i32_0 = arith.constant 0 : i32
    %c0_i32_1 = arith.constant 0 : i32
    return %c0_i32, %arg0, %c0_i32_0 : i32, i32, i32
  }
  func.func @transform_1(%arg0: i32) -> (i32, i32) {
    %c0_i32 = arith.constant 0 : i32
    %c0_i32_0 = arith.constant 0 : i32
    %c0_i32_1 = arith.constant 0 : i32
    return %c0_i32, %c0_i32_0 : i32, i32
  }
  func.func @transform_2(%arg0: i32) -> (i32, i32) {
    %c0_i32 = arith.constant 0 : i32
    %c0_i32_0 = arith.constant 0 : i32
    %c0_i32_1 = arith.constant 0 : i32
    return %c0_i32, %c0_i32_0 : i32, i32
  }
  func.func @transform_3(%arg0: i32) -> (i32, i32) {
    %c0_i32 = arith.constant 0 : i32
    %c0_i32_0 = arith.constant 0 : i32
    %c0_i32_1 = arith.constant 0 : i32
    return %c0_i32, %c0_i32_0 : i32, i32
  }
  func.func @transform_4(%arg0: i32) -> (i32, i32) {
    %c0_i32 = arith.constant 0 : i32
    %c0_i32_0 = arith.constant 0 : i32
    %c0_i32_1 = arith.constant 0 : i32
    return %c0_i32, %c0_i32_0 : i32, i32
  }
}

module attributes {stable_mosaic.version = 11 : i64} {
  func.func @_wsum_kernel(%arg0: i32, %arg1: memref<1x3xf32, #tpu.memory_space<smem>>, %arg2: memref<3x8x128xf32, #tpu.memory_space<vmem>>, %arg3: memref<8x128xf32, #tpu.memory_space<vmem>>) attributes {dimension_semantics = [#tpu.dimension_semantics<parallel>], iteration_bounds = array<i64: 1>, scalar_prefetch = 0 : i64, scratch_operands = 0 : i64, tpu.core_type = #tpu.core_type<tc>, window_params = [{transform_indices = @transform_0, window_bounds = array<i64: 1, 3>}, {transform_indices = @transform_1, window_bounds = array<i64: 3, 8, 128>}, {transform_indices = @transform_2, window_bounds = array<i64: 8, 128>}]} {
    %c0 = arith.constant 0 : index
    %c0_0 = arith.constant 0 : index
    %c0_1 = arith.constant 0 : index
    %0 = vector.load %arg2[%c0, %c0_0, %c0_1] : memref<3x8x128xf32, #tpu.memory_space<vmem>>, vector<1x8x128xf32>
    %1 = vector.shape_cast %0 : vector<1x8x128xf32> to vector<8x128xf32>
    %c0_2 = arith.constant 0 : index
    %c0_3 = arith.constant 0 : index
    %2 = memref.load %arg1[%c0_2, %c0_3] : memref<1x3xf32, #tpu.memory_space<smem>>
    %3 = vector.broadcast %2 : f32 to vector<8x128xf32>
    %4 = arith.mulf %1, %3 : vector<8x128xf32>
    %c1 = arith.constant 1 : index
    %c0_4 = arith.constant 0 : index
    %c0_5 = arith.constant 0 : index
    %5 = vector.load %arg2[%c1, %c0_4, %c0_5] : memref<3x8x128xf32, #tpu.memory_space<vmem>>, vector<1x8x128xf32>
    %6 = vector.shape_cast %5 : vector<1x8x128xf32> to vector<8x128xf32>
    %c0_6 = arith.constant 0 : index
    %c1_7 = arith.constant 1 : index
    %7 = memref.load %arg1[%c0_6, %c1_7] : memref<1x3xf32, #tpu.memory_space<smem>>
    %8 = vector.broadcast %7 : f32 to vector<8x128xf32>
    %9 = arith.mulf %6, %8 : vector<8x128xf32>
    %10 = arith.addf %4, %9 : vector<8x128xf32>
    %c2 = arith.constant 2 : index
    %c0_8 = arith.constant 0 : index
    %c0_9 = arith.constant 0 : index
    %11 = vector.load %arg2[%c2, %c0_8, %c0_9] : memref<3x8x128xf32, #tpu.memory_space<vmem>>, vector<1x8x128xf32>
    %12 = vector.shape_cast %11 : vector<1x8x128xf32> to vector<8x128xf32>
    %c0_10 = arith.constant 0 : index
    %c2_11 = arith.constant 2 : index
    %13 = memref.load %arg1[%c0_10, %c2_11] : memref<1x3xf32, #tpu.memory_space<smem>>
    %14 = vector.broadcast %13 : f32 to vector<8x128xf32>
    %15 = arith.mulf %12, %14 : vector<8x128xf32>
    %16 = arith.addf %10, %15 : vector<8x128xf32>
    %c0_12 = arith.constant 0 : index
    %c0_13 = arith.constant 0 : index
    %17 = vector.load %arg3[%c0_12, %c0_13] : memref<8x128xf32, #tpu.memory_space<vmem>>, vector<8x128xf32>
    tpu.vector_store %arg3[%c0_12, %c0_13], %16 {strides = array<i32>} : memref<8x128xf32, #tpu.memory_space<vmem>>, vector<8x128xf32>,
    return
  }
  func.func @transform_0(%arg0: i32) -> (i32, i32) {
    %c0_i32 = arith.constant 0 : i32
    %c0_i32_0 = arith.constant 0 : i32
    %c0_i32_1 = arith.constant 0 : i32
    return %c0_i32, %c0_i32_0 : i32, i32
  }
  func.func @transform_1(%arg0: i32) -> (i32, i32, i32) {
    %c0_i32 = arith.constant 0 : i32
    %c0_i32_0 = arith.constant 0 : i32
    %c0_i32_1 = arith.constant 0 : i32
    return %c0_i32, %arg0, %c0_i32_0 : i32, i32, i32
  }
  func.func @transform_2(%arg0: i32) -> (i32, i32) {
    %c0_i32 = arith.constant 0 : i32
    %c0_i32_0 = arith.constant 0 : i32
    return %arg0, %c0_i32 : i32, i32
  }
}

</mosaic_0001>

<llo_original>
// kernel: fus_att_forward.3
$region0: #{fus_att_forward.3}
  #allocation0 [shape = 'u32[]', space=smem, size = 0x4, offset = 0x4, fixed_abs, tag = 'smem constant byte address 0x4 - core index']
  #allocation1 [shape = 'u32[144,128]{1,0:T(1,128)}', space=vmem, size = 0x12000, scoped, tag = 'internal scratch']
  %s0 = inlined_call_operand.vmem [shape: f32[1,3], index: 0, kind: input, shape index: {}]
  %s1 = inlined_call_operand.vmem [shape: f32[3,8,128], index: 1, kind: input, shape index: {}]
  %s2 = inlined_call_operand.vmem [shape: f32[8,128], index: 2, kind: output, shape index: {}]
  %s3 = sld [smem:[#allocation0]]
  $region22: #{fus_att_forward.3} parent=0
    _
  %s5 = ssub.s32 1, %s3
  %s6 = scalar_select 0, %s5, %s3
  $region1: #{fus_att_forward.3} parent=0
    #allocation2 [shape = 'u8[512]{0}', space=smem, size = 0x200, scoped, tag = 'input window, operand 0, single buffered']
    #allocation3 [shape = 's32[1]{0}', space=sflag, size = 0x4, scoped, tag = 'scoped memory for fus_att_forward.3']
    %7 = vsyncpa [#allocation3], 0
    // Predicated region
    $region2: #{fus_att_forward.3} parent=1 // pred_check
      _
    $region3: #{fus_att_forward.3} parent=1 // pred_check_branch
      %9 = sbr.rel (0) target = $region5
    $region4: #{fus_att_forward.3} parent=1 // pred_region
      %s11 = ssub.s32 16, 16
      %12 = vsyncadd [#allocation3], %s11
      %s14 = sshll.u32 %s0, 4
      %s15 = int_to_ptr.vmem [resolvable:$true] %s14
      %17 = dma.vmem_to_smem %s15, 16, [#allocation2], [#allocation3]
    $region5: #{fus_att_forward.3} parent=1 // pred_fallthru
      _
    // Predicated region
    $region6: #{fus_att_forward.3} parent=1 // pred_check
      _
    $region7: #{fus_att_forward.3} parent=1 // pred_check_branch
      %19 = sbr.rel (0) target = $region9
    $region8: #{fus_att_forward.3} parent=1 // pred_region
      _
    $region9: #{fus_att_forward.3} parent=1 // pred_fallthru
      _
    // Predicated region
    $region10: #{fus_att_forward.3} parent=1 // pred_check
      _
    $region11: #{fus_att_forward.3} parent=1 // pred_check_branch
      %21 = sbr.rel (0) target = $region13
    $region12: #{fus_att_forward.3} parent=1 // pred_region
      %22 = dma.done [#allocation3], 16
    $region13: #{fus_att_forward.3} parent=1 // pred_fallthru
      _
    %23 = sfence
    %v24 = vld [vmem:[%s1] sm:$0xff]
    %s25 = sld [smem:[#allocation2]]
    %v26 = vstv %s25
    %v27 = vmul.f32 %v24, %v26
    %s28 = scalar_lea.vmem %s1, 8
    %v29 = vld [vmem:[%s28] sm:$0xff]
    %s30 = sld [smem:[#allocation2 + $0x1]]
    %v31 = vstv %s30
    %v32 = vmul.f32 %v29, %v31
    %v33 = vadd.f32 %v27, %v32
    %s34 = scalar_lea.vmem %s1, 16
    %v35 = vld [vmem:[%s34] sm:$0xff]
    %s36 = sld [smem:[#allocation2 + $0x2]]
    %v37 = vstv %s36
    %v38 = vmul.f32 %v35, %v37
    %v39 = vadd.f32 %v33, %v38
    %40 = vst [vmem:[%s2] sm:$0xff] %v39
    // Predicated region
    $region14: #{fus_att_forward.3} parent=1 // pred_check
      _
    $region15: #{fus_att_forward.3} parent=1 // pred_check_branch
      %42 = sbr.rel (0) target = $region17
    $region16: #{fus_att_forward.3} parent=1 // pred_region
      _
    $region17: #{fus_att_forward.3} parent=1 // pred_fallthru
      _
    // Predicated region
    $region18: #{fus_att_forward.3} parent=1 // pred_check
      _
    $region19: #{fus_att_forward.3} parent=1 // pred_check_branch
      %44 = sbr.rel (0) target = $region21
    $region20: #{fus_att_forward.3} parent=1 // pred_region
      _
    $region21: #{fus_att_forward.3} parent=1 // pred_fallthru
      _
    %45 = vsyncpa [#allocation3], 1

// kernel: fus_att_forward.2
$region0: #{fus_att_forward.2}
  #allocation0 [shape = 'u32[]', space=smem, size = 0x4, offset = 0x4, fixed_abs, tag = 'smem constant byte address 0x4 - core index']
  #allocation1 [shape = 'u32[144,128]{1,0:T(1,128)}', space=vmem, size = 0x12000, scoped, tag = 'internal scratch']
  %s0 = inlined_call_operand.vmem [shape: f32[3,8,128], index: 0, kind: input, shape index: {}]
  %s1 = inlined_call_operand.vmem [shape: f32[128,128], index: 1, kind: input, shape index: {}]
  %s2 = inlined_call_operand.vmem [shape: f32[1,128], index: 2, kind: input, shape index: {}]
  %s3 = inlined_call_operand.vmem [shape: f32[1,128], index: 3, kind: input, shape index: {}]
  %s4 = inlined_call_operand.vmem [shape: f32[3,128], index: 4, kind: output, shape index: {}]
  %s5 = sld [smem:[#allocation0]]
  $region30: #{fus_att_forward.2} parent=0
    _
  %s7 = ssub.s32 1, %s5
  %s8 = scalar_select 0, %s7, %s5
  // Predicated region
  $region2: #{fus_att_forward.2} parent=0 // pred_check
    _
  $region3: #{fus_att_forward.2} parent=0 // pred_check_branch
    %10 = sbr.rel (0) target = $region5
  $region4: #{fus_att_forward.2} parent=0 // pred_region
    _
  $region5: #{fus_att_forward.2} parent=0 // pred_fallthru
    _
  // Predicated region
  $region6: #{fus_att_forward.2} parent=0 // pred_check
    _
  $region7: #{fus_att_forward.2} parent=0 // pred_check_branch
    %12 = sbr.rel (0) target = $region9
  $region8: #{fus_att_forward.2} parent=0 // pred_region
    _
  $region9: #{fus_att_forward.2} parent=0 // pred_fallthru
    _
  // Predicated region
  $region10: #{fus_att_forward.2} parent=0 // pred_check
    _
  $region11: #{fus_att_forward.2} parent=0 // pred_check_branch
    %14 = sbr.rel (0) target = $region13
  $region12: #{fus_att_forward.2} parent=0 // pred_region
    _
  $region13: #{fus_att_forward.2} parent=0 // pred_fallthru
    _
  // Predicated region
  $region14: #{fus_att_forward.2} parent=0 // pred_check
    _
  $region15: #{fus_att_forward.2} parent=0 // pred_check_branch
    %16 = sbr.rel (0) target = $region17
  $region16: #{fus_att_forward.2} parent=0 // pred_region
    _
  $region17: #{fus_att_forward.2} parent=0 // pred_fallthru
    _
  %p17 = scmp.eq.s32.totalorder 0, 0
  // Predicated region
  $region18: #{fus_att_forward.2} parent=0 // pred_check
    %p18 = pneg %p17
  $region19: #{fus_att_forward.2} parent=0 // pred_check_branch
    %20 = sbr.rel (%p18) target = $region21
  $region20: #{fus_att_forward.2} parent=0 // pred_region
    %21 = vst [vmem:[%s4] sm:$0x7] 0.0
  $region21: #{fus_att_forward.2} parent=0 // pred_fallthru
    _
  %v22 = vld [vmem:[%s0] sm:$0xff]
  %v23 = vld [vmem:[%s0 + $0x8] sm:$0xff]
  %v24 = vld [vmem:[%s0 + $0x10] sm:$0xff]
  %v25 = vld [vmem:[%s1] sm:$0xff]
  %v26 = vld [vmem:[%s1 + $0x8] sm:$0xff]
  %v27 = vld [vmem:[%s1 + $0x10] sm:$0xff]
  %v28 = vld [vmem:[%s1 + $0x18] sm:$0xff]
  %v29 = vld [vmem:[%s1 + $0x20] sm:$0xff]
  %v30 = vld [vmem:[%s1 + $0x28] sm:$0xff]
  %v31 = vld [vmem:[%s1 + $0x30] sm:$0xff]
  %v32 = vld [vmem:[%s1 + $0x38] sm:$0xff]
  %v33 = vld [vmem:[%s1 + $0x40] sm:$0xff]
  %v34 = vld [vmem:[%s1 + $0x48] sm:$0xff]
  %v35 = vld [vmem:[%s1 + $0x50] sm:$0xff]
  %v36 = vld [vmem:[%s1 + $0x58] sm:$0xff]
  %v37 = vld [vmem:[%s1 + $0x60] sm:$0xff]
  %v38 = vld [vmem:[%s1 + $0x68] sm:$0xff]
  %v39 = vld [vmem:[%s1 + $0x70] sm:$0xff]
  %v40 = vld [vmem:[%s1 + $0x78] sm:$0xff]
  %v41 = vld [vmem:[%s2] sm:$0x1]
  %v43 = vlaneseq
  %v44 = vshrl.u32 %v43, 7
  %v45 = vsub.s32 0, %v44
  %v46 = vrot.slane %v41, %v45
  %48 = vmatprep.subr.mxu0 0.0
  %49 = vmatpush1.msra.mxu0 %v25
  %50 = vmatprep.subr.mxu0 0.0
  %51 = vmatpush1.msra.mxu0 %v26
  %52 = vmatprep.subr.mxu0 0.0
  %53 = vmatpush1.msra.mxu0 %v27
  %54 = vmatprep.subr.mxu0 0.0
  %55 = vmatpush1.msra.mxu0 %v28
  %56 = vmatprep.subr.mxu0 0.0
  %57 = vmatpush1.msra.mxu0 %v29
  %58 = vmatprep.subr.mxu0 0.0
  %59 = vmatpush1.msra.mxu0 %v30
  %60 = vmatprep.subr.mxu0 0.0
  %61 = vmatpush1.msra.mxu0 %v31
  %62 = vmatprep.subr.mxu0 0.0
  %63 = vmatpush1.msra.mxu0 %v32
  %64 = vmatprep.subr.mxu0 0.0
  %65 = vmatpush1.msra.mxu0 %v33
  %66 = vmatprep.subr.mxu0 0.0
  %67 = vmatpush1.msra.mxu0 %v34
  %68 = vmatprep.subr.mxu0 0.0
  %69 = vmatpush1.msra.mxu0 %v35
  %70 = vmatprep.subr.mxu0 0.0
  %71 = vmatpush1.msra.mxu0 %v36
  %72 = vmatprep.subr.mxu0 0.0
  %73 = vmatpush1.msra.mxu0 %v37
  %74 = vmatprep.subr.mxu0 0.0
  %75 = vmatpush1.msra.mxu0 %v38
  %76 = vmatprep.subr.mxu0 0.0
  %77 = vmatpush1.msra.mxu0 %v39
  %78 = vmatprep.subr.mxu0 0.0
  %79 = vmatpush1.msra.mxu0 %v40
  %80 = vmatprep.subr.mxu0 0.0
  %81 = vmatpush1.msra.mxu0 0.0
  %82 = vmatprep.subr.mxu0 0.0
  %83 = vmatpush1.msra.mxu0 0.0
  %84 = vmatprep.subr.mxu0 0.0
  %85 = vmatpush1.msra.mxu0 0.0
  %86 = vmatprep.subr.mxu0 0.0
  %87 = vmatpush1.msra.mxu0 0.0
  %88 = vmatprep.subr.mxu0 0.0
  %89 = vmatpush1.msra.mxu0 0.0
  %90 = vmatprep.subr.mxu0 0.0
  %91 = vmatpush1.msra.mxu0 0.0
  %92 = vmatprep.subr.mxu0 0.0
  %93 = vmatpush1.msra.mxu0 0.0
  %94 = vmatprep.subr.mxu0 0.0
  %95 = vmatpush1.msra.mxu0 0.0
  %96 = vmatprep.subr.mxu0 0.0
  %97 = vmatpush1.msra.mxu0 0.0
  %98 = vmatprep.subr.mxu0 0.0
  %99 = vmatpush1.msra.mxu0 0.0
  %100 = vmatprep.subr.mxu0 0.0
  %101 = vmatpush1.msra.mxu0 0.0
  %102 = vmatprep.subr.mxu0 0.0
  %103 = vmatpush1.msra.mxu0 0.0
  %104 = vmatprep.subr.mxu0 0.0
  %105 = vmatpush1.msra.mxu0 0.0
  %106 = vmatprep.subr.mxu0 0.0
  %107 = vmatpush1.msra.mxu0 0.0
  %108 = vmatprep.subr.mxu0 0.0
  %109 = vmatpush1.msra.mxu0 0.0
  %110 = vmatprep.subr.mxu0 0.0
  %111 = vmatpush1.msra.mxu0 0.0
  %112 = vmatprep.mubr.f32.mxu0 0.0
  %113 = vmatmul.mubr.f32.gmra.mrb[0].mxu0 %v22
  %v114 = vpop.f32.mrb[0].mxu0
  %v115 = vadd.f32 %v46, %v114
  %v116 = vpop.f32.mrb[0].mxu0
  %117 = vmatprep.mubr.f32.mxu0 0.0
  %118 = vmatmul.mubr.f32.gmra.mrb[0].mxu0 %v23
  %v119 = vpop.f32.mrb[0].mxu0
  %v120 = vadd.f32 %v46, %v119
  %v121 = vpop.f32.mrb[0].mxu0
  %122 = vmatprep.mubr.f32.mxu0 0.0
  %123 = vmatmul.mubr.f32.gmra.mrb[0].mxu0 %v24
  %v124 = vpop.f32.mrb[0].mxu0
  %v125 = vadd.f32 %v46, %v124
  %v126 = vpop.f32.mrb[0].mxu0
  %127 = vdwg.mxu0
  %v128 = vtanh.pop %v115
  %v129 = vtanh.pop %v120
  %v130 = vtanh.pop %v125
  %v131 = vld [vmem:[%s3] sm:$0x1]
  %v133 = vlaneseq
  %v134 = vshrl.u32 %v133, 7
  %v135 = vsub.s32 0, %v134
  %v136 = vrot.slane %v131, %v135
  %v138 = vmul.f32 %v128, %v136
  %v139 = vmul.f32 %v129, %v136
  %v140 = vmul.f32 %v130, %v136
  %v141 = vld [vmem:[%s4] sm:$0x7]
  %v142 = vrot.slane %v138, 4
  %v143 = vadd.f32 %v138, %v142
  %v144 = vrot.slane %v143, 2
  %v145 = vadd.f32 %v143, %v144
  %v146 = vrot.slane %v145, 1
  %v147 = vadd.f32 %v145, %v146
  %v148 = vrot.slane %v139, 4
  %v149 = vadd.f32 %v139, %v148
  %v150 = vrot.slane %v149, 2
  %v151 = vadd.f32 %v149, %v150
  %v152 = vrot.slane %v151, 1
  %v153 = vadd.f32 %v151, %v152
  %v154 = vrot.slane %v140, 4
  %v155 = vadd.f32 %v140, %v154
  %v156 = vrot.slane %v155, 2
  %v157 = vadd.f32 %v155, %v156
  %v158 = vrot.slane %v157, 1
  %v159 = vadd.f32 %v157, %v158
  %vm163 = vcmask 1041409
  %v164 = vsel %vm163, %v153, %v147
  %vm165 = vcmask 1042434
  %v166 = vsel %vm165, %v159, %v164
  %v168 = vadd.f32 %v141, %v166
  %169 = vst [vmem:[%s4] sm:$0x7] %v168
  // Predicated region
  $region22: #{fus_att_forward.2} parent=0 // pred_check
    _
  $region23: #{fus_att_forward.2} parent=0 // pred_check_branch
    %171 = sbr.rel (0) target = $region25
  $region24: #{fus_att_forward.2} parent=0 // pred_region
    _
  $region25: #{fus_att_forward.2} parent=0 // pred_fallthru
    _
  // Predicated region
  $region26: #{fus_att_forward.2} parent=0 // pred_check
    _
  $region27: #{fus_att_forward.2} parent=0 // pred_check_branch
    %173 = sbr.rel (0) target = $region29
  $region28: #{fus_att_forward.2} parent=0 // pred_region
    _
  $region29: #{fus_att_forward.2} parent=0 // pred_fallthru
    _

</llo_original>
